<compile_context>
chip_gen: v7x
topology: tpu7x:2x2x1
jax: 0.10.0
libtpu: 0.0.40
codegen_flags: <defaults>
</compile_context>

<pallas_src>
import jax
import jax.numpy as jnp
from jax.experimental import pallas as pl
from jax.experimental.pallas import tpu as pltpu


def se_kernel(x_ref, w1_ref, b1_ref, w2_ref, b2_ref, o_ref):
    # x_ref: (TN, HW, C) channels-last.  w1: (C, Ch), b1: (1, Ch),
    # w2: (Ch, C), b2: (1, C).  o_ref: (TN, HW, C).
    x = x_ref[...]                                               # (TN, HW, C)

    # Squeeze: global average pool over the spatial (sublane) axis, in f32.
    squeezed = jnp.mean(x.astype(jnp.float32), axis=1)           # (TN, C)

    # Excite: two tiny FC layers, batched over the TN rows of this block.
    h = jnp.dot(squeezed, w1_ref[...],
                preferred_element_type=jnp.float32) + b1_ref[...]
    h = jnp.maximum(h, 0.0)                                      # (TN, Ch)
    s = jnp.dot(h, w2_ref[...],
                preferred_element_type=jnp.float32) + b2_ref[...]
    s = jax.nn.sigmoid(s)                                        # (TN, C)

    # Rescale: broadcast the per-channel gate over the spatial axis.
    o_ref[...] = (x * s[:, None, :].astype(x.dtype)).astype(o_ref.dtype)


def _choose_tn(n, per_elem_bytes, target_bytes=1 << 20):
    """Batch elements per grid step: ~1 MiB blocks, but keep >=2 grid steps."""
    tn = max(1, min(n, target_bytes // max(per_elem_bytes, 1)))
    if n >= 2 and tn >= n:
        tn = n // 2          # keep a >=2-step parallel axis for v7x megacore
    while n % tn:
        tn -= 1
    return tn


def squeeze_and_excitation(x, w1, b1, w2, b2):
    """x: (N, C, H, W).  w1: (C, Ch), b1: (Ch,), w2: (Ch, C), b2: (C,).

    Linear weights are stored pre-transposed as (in_features, out_features).
    """
    N, C, H, W = x.shape
    HW = H * W
    Ch = w1.shape[1]

    # Channels-last, spatially flattened: (N, HW, C).  Lane axis = C.
    x_cl = jnp.transpose(x, (0, 2, 3, 1)).reshape(N, HW, C)
    b1_2d = b1.reshape(1, Ch)
    b2_2d = b2.reshape(1, C)

    elem_bytes = HW * C * x.dtype.itemsize
    TN = _choose_tn(N, elem_bytes)
    grid = (N // TN,)

    # TODO(synk): also tile HW if a single batch element ever exceeds the
    # per-core VMEM budget (not needed for typical SE feature-map sizes).
    block_bytes = TN * elem_bytes
    est_vmem = 2 * 2 * block_bytes + 4 * (w1.size + w2.size + Ch + C)
    vmem_limit = None
    if est_vmem > 30 * 1024 * 1024:
        vmem_limit = min(est_vmem + (4 << 20), 60 << 20)

    out_cl = pl.pallas_call(
        se_kernel,
        out_shape=jax.ShapeDtypeStruct((N, HW, C), x.dtype),
        grid_spec=pltpu.PrefetchScalarGridSpec(
            num_scalar_prefetch=0,
            grid=grid,
            in_specs=[
                pl.BlockSpec((TN, HW, C), lambda n: (n, 0, 0)),
                pl.BlockSpec((C, Ch), lambda n: (0, 0)),
                pl.BlockSpec((1, Ch), lambda n: (0, 0)),
                pl.BlockSpec((Ch, C), lambda n: (0, 0)),
                pl.BlockSpec((1, C), lambda n: (0, 0)),
            ],
            out_specs=pl.BlockSpec((TN, HW, C), lambda n: (n, 0, 0)),
        ),
        compiler_params=pltpu.CompilerParams(
            dimension_semantics=("parallel",),
            vmem_limit_bytes=vmem_limit),
    )(x_cl, w1, b1_2d, w2, b2_2d)

    # Back to NCHW.
    return out_cl.reshape(N, H, W, C).transpose(0, 3, 1, 2)


def reference(x, w1, b1, w2, b2):
    squeezed = jnp.mean(x, axis=(2, 3))                     # (N, C)
    h = jnp.maximum(squeezed @ w1 + b1, 0.0)
    s = jax.nn.sigmoid(h @ w2 + b2)
    return x * s[:, :, None, None]


if __name__ == "__main__":
    # Module config: channels=128, r=16 -> hidden = channels // r = 8.
    N, C, H, W = 2, 128, 8, 8
    r = 16
    Ch = C // r

    key = jax.random.PRNGKey(0)
    kx, k1, k2, k3, k4 = jax.random.split(key, 5)

    x = jax.random.normal(kx, (N, C, H, W), dtype=jnp.float32)
    # Deterministic synthetic parameters (PyTorch Linear weights stored
    # pre-transposed as (in_features, out_features)).
    w1 = jax.random.normal(k1, (C, Ch), dtype=jnp.float32) * 0.2
    b1 = jax.random.normal(k2, (Ch,), dtype=jnp.float32) * 0.1
    w2 = jax.random.normal(k3, (Ch, C), dtype=jnp.float32) * 0.2
    b2 = jax.random.normal(k4, (C,), dtype=jnp.float32) * 0.1

    out = squeeze_and_excitation(x, w1, b1, w2, b2)
    out = jax.block_until_ready(out)

    ref = reference(x, w1, b1, w2, b2)
    assert out.shape == (N, C, H, W)
    assert jnp.allclose(out, ref, atol=1e-4, rtol=1e-4), "mismatch vs reference"

    print("KERNEL_OK")
</pallas_src>

<mosaic_0001>
module attributes {stable_mosaic.version = 11 : i64} {
  func.func @se_kernel(%arg0: i32, %arg1: memref<1x64x128xf32, #tpu.memory_space<vmem>>, %arg2: memref<128x8xf32, #tpu.memory_space<vmem>>, %arg3: memref<1x8xf32, #tpu.memory_space<vmem>>, %arg4: memref<8x128xf32, #tpu.memory_space<vmem>>, %arg5: memref<1x128xf32, #tpu.memory_space<vmem>>, %arg6: memref<1x64x128xf32, #tpu.memory_space<vmem>>) attributes {dimension_semantics = [#tpu.dimension_semantics<parallel>], iteration_bounds = array<i64: 2>, scalar_prefetch = 0 : i64, scratch_operands = 0 : i64, tpu.core_type = #tpu.core_type<tc>, window_params = [{transform_indices = @transform_0, window_bounds = array<i64: 1, 64, 128>}, {pipeline_mode = #tpu.pipeline_mode<synchronous>, transform_indices = @transform_1, window_bounds = array<i64: 128, 8>}, {pipeline_mode = #tpu.pipeline_mode<synchronous>, transform_indices = @transform_2, window_bounds = array<i64: 1, 8>}, {pipeline_mode = #tpu.pipeline_mode<synchronous>, transform_indices = @transform_3, window_bounds = array<i64: 8, 128>}, {pipeline_mode = #tpu.pipeline_mode<synchronous>, transform_indices = @transform_4, window_bounds = array<i64: 1, 128>}, {transform_indices = @transform_5, window_bounds = array<i64: 1, 64, 128>}]} {
    %c0 = arith.constant 0 : index
    %c0_0 = arith.constant 0 : index
    %c0_1 = arith.constant 0 : index
    %0 = vector.load %arg1[%c0, %c0_0, %c0_1] : memref<1x64x128xf32, #tpu.memory_space<vmem>>, vector<1x64x128xf32>
    %cst = arith.constant dense<0.000000e+00> : vector<1x128xf32>
    %1 = vector.multi_reduction <add>, %0, %cst [1] : vector<1x64x128xf32> to vector<1x128xf32>
    %cst_2 = arith.constant 6.400000e+01 : f32
    %2 = vector.broadcast %cst_2 : f32 to vector<1x128xf32>
    %3 = arith.divf %1, %2 : vector<1x128xf32>
    %c0_3 = arith.constant 0 : index
    %c0_4 = arith.constant 0 : index
    %4 = vector.load %arg2[%c0_3, %c0_4] : memref<128x8xf32, #tpu.memory_space<vmem>>, vector<128x8xf32>
    %cst_5 = arith.constant dense<0.000000e+00> : vector<1x8xf32>
    %5 = tpu.matmul %3, %4, %cst_5 {dimension_numbers = #tpu.dot_dimension_numbers<[1], [0], [0], [1], [0, 0, 1, 1], [], []>} : vector<1x128xf32>, vector<128x8xf32>, vector<1x8xf32> -> vector<1x8xf32>
    %c0_6 = arith.constant 0 : index
    %c0_7 = arith.constant 0 : index
    %6 = vector.load %arg3[%c0_6, %c0_7] : memref<1x8xf32, #tpu.memory_space<vmem>>, vector<1x8xf32>
    %7 = arith.addf %5, %6 : vector<1x8xf32>
    %cst_8 = arith.constant 0.000000e+00 : f32
    %8 = vector.broadcast %cst_8 : f32 to vector<1x8xf32>
    %9 = arith.maximumf %7, %8 : vector<1x8xf32>
    %c0_9 = arith.constant 0 : index
    %c0_10 = arith.constant 0 : index
    %10 = vector.load %arg4[%c0_9, %c0_10] : memref<8x128xf32, #tpu.memory_space<vmem>>, vector<8x128xf32>
    %cst_11 = arith.constant dense<0.000000e+00> : vector<1x128xf32>
    %11 = tpu.matmul %9, %10, %cst_11 {dimension_numbers = #tpu.dot_dimension_numbers<[1], [0], [0], [1], [0, 0, 1, 1], [], []>} : vector<1x8xf32>, vector<8x128xf32>, vector<1x128xf32> -> vector<1x128xf32>
    %c0_12 = arith.constant 0 : index
    %c0_13 = arith.constant 0 : index
    %12 = vector.load %arg5[%c0_12, %c0_13] : memref<1x128xf32, #tpu.memory_space<vmem>>, vector<1x128xf32>
    %13 = arith.addf %11, %12 : vector<1x128xf32>
    %14 = arith.negf %13 : vector<1x128xf32>
    %15 = math.exp %14 : vector<1x128xf32>
    %cst_14 = arith.constant 1.000000e+00 : f32
    %16 = vector.broadcast %cst_14 : f32 to vector<1x128xf32>
    %17 = arith.addf %16, %15 : vector<1x128xf32>
    %18 = arith.divf %16, %17 : vector<1x128xf32>
    %19 = vector.shape_cast %18 : vector<1x128xf32> to vector<1x1x128xf32>
    %20 = vector.broadcast %19 : vector<1x1x128xf32> to vector<1x64x128xf32>
    %21 = arith.mulf %0, %20 : vector<1x64x128xf32>
    %c0_15 = arith.constant 0 : index
    %c0_16 = arith.constant 0 : index
    %c0_17 = arith.constant 0 : index
    %22 = vector.load %arg6[%c0_15, %c0_16, %c0_17] : memref<1x64x128xf32, #tpu.memory_space<vmem>>, vector<1x64x128xf32>
    tpu.vector_store %arg6[%c0_15, %c0_16, %c0_17], %21 {strides = array<i32>} : memref<1x64x128xf32, #tpu.memory_space<vmem>>, vector<1x64x128xf32>,
    return
  }
  func.func @transform_0(%arg0: i32) -> (i32, i32, i32) {
    %c0_i32 = arith.constant 0 : i32
    %c0_i32_0 = arith.constant 0 : i32
    %c0_i32_1 = arith.constant 0 : i32
    return %arg0, %c0_i32, %c0_i32_0 : i32, i32, i32
  }
  func.func @transform_1(%arg0: i32) -> (i32, i32) {
    %c0_i32 = arith.constant 0 : i32
    %c0_i32_0 = arith.constant 0 : i32
    %c0_i32_1 = arith.constant 0 : i32
    return %c0_i32, %c0_i32_0 : i32, i32
  }
  func.func @transform_2(%arg0: i32) -> (i32, i32) {
    %c0_i32 = arith.constant 0 : i32
    %c0_i32_0 = arith.constant 0 : i32
    %c0_i32_1 = arith.constant 0 : i32
    return %c0_i32, %c0_i32_0 : i32, i32
  }
  func.func @transform_3(%arg0: i32) -> (i32, i32) {
    %c0_i32 = arith.constant 0 : i32
    %c0_i32_0 = arith.constant 0 : i32
    %c0_i32_1 = arith.constant 0 : i32
    return %c0_i32, %c0_i32_0 : i32, i32
  }
  func.func @transform_4(%arg0: i32) -> (i32, i32) {
    %c0_i32 = arith.constant 0 : i32
    %c0_i32_0 = arith.constant 0 : i32
    %c0_i32_1 = arith.constant 0 : i32
    return %c0_i32, %c0_i32_0 : i32, i32
  }
  func.func @transform_5(%arg0: i32) -> (i32, i32, i32) {
    %c0_i32 = arith.constant 0 : i32
    %c0_i32_0 = arith.constant 0 : i32
    %c0_i32_1 = arith.constant 0 : i32
    return %arg0, %c0_i32, %c0_i32_0 : i32, i32, i32
  }
}

</mosaic_0001>

<llo_original>
// kernel: tpu_custom_call.1
$region0: #{tpu_custom_call.1}
  #allocation0 [shape = 'u32[]', space=smem, size = 0x4, offset = 0x4, fixed_abs, tag = 'smem constant byte address 0x4 - core index']
  #allocation1 [shape = 'u32[144,128]{1,0:T(1,128)}', space=vmem, size = 0x12000, scoped, tag = 'internal scratch']
  %s0 = inlined_call_operand.vmem [shape: f32[2,64,128], index: 0, kind: input, shape index: {}]
  %s1 = inlined_call_operand.vmem [shape: f32[128,8], index: 1, kind: input, shape index: {}]
  %s2 = inlined_call_operand.vmem [shape: f32[1,8], index: 2, kind: input, shape index: {}]
  %s3 = inlined_call_operand.vmem [shape: f32[8,128], index: 3, kind: input, shape index: {}]
  %s4 = inlined_call_operand.vmem [shape: f32[1,128], index: 4, kind: input, shape index: {}]
  %s5 = inlined_call_operand.hbm [shape: f32[2,64,128], index: 5, kind: output, shape index: {}]
  %s6 = sld [smem:[#allocation0]]
  $region53: #{tpu_custom_call.1} parent=0
    _
  %s8 = ssub.s32 1, %s6
  %s9 = scalar_select 0, %s8, %s6
  $region1: #{tpu_custom_call.1} parent=0
    #allocation2 [shape = 'u8[65536]{0}', space=vmem, size = 0x10000, scoped, tag = 'output window, operand 0']
    #allocation3 [shape = 's32[2]{0}', space=sflag, size = 0x8, scoped, tag = 'scoped memory for tpu_custom_call.1']
    %10 = vsyncpa [#allocation3], 0
    %s11 = scalar_lea.sflag [#allocation3], 1
    %12 = vsyncpa %s11, 0
    loop: start=0, step=1, limit=4
    $region2: #{tpu_custom_call.1} parent=1 // loop_pre_header
      _
    $region3: #{tpu_custom_call.1} parent=1 // loop_header
      %s14 = sphi 0, %s18
      %p15 = scmp.ge.s32.totalorder %s14, 4
      %s24 = sphi 0, %s26
      %s27 = sphi 0, %s24
      %s28 = sphi 0, %s27
      %s44 = sphi 0, %s28
      %s48 = sphi 0, %s48
      %s50 = sphi 0, %s48
      %s51 = sphi 0, %s50
      %s65 = sphi 0, %s51
      %s69 = sphi 0, %s69
      %s71 = sphi 0, %s69
      %s72 = sphi 0, %s71
      %s86 = sphi 0, %s72
      %s90 = sphi 0, %s90
      %s92 = sphi 0, %s90
      %s93 = sphi 0, %s92
      %s107 = sphi 0, %s93
      %s111 = sphi 0, %s111
      %s113 = sphi 0, %s111
      %s114 = sphi 0, %s113
      %s128 = sphi 0, %s114
      %s134 = sphi 0, %s136
      %s137 = sphi 0, %s134
      %s138 = sphi 0, %s137
      %s154 = sphi 0, %s138
    $region4: #{tpu_custom_call.1} parent=1 // loop_header_branch
      %17 = sbr.rel (%p15) target = $region8
    $region5: #{tpu_custom_call.1} parent=1 // loop_body
      %s19 = ssub.s32 %s14, 1
      %s20 = ssub.s32 %s14, 2
      %s21 = sadd.s32 %s14, 1
      %s22 = ssub.s32 %s14, %s21
      %p23 = scmp.eq.s32.totalorder %s22, 0
      %s25 = sadd.s32 %s24, 1
      %s26 = scalar_select %p23, %s24, %s25
      %p29 = pneg %p23
      %p30 = scmp.eq.s32.totalorder %s14, 1
      %p31 = por %p29, %p30
      %p32 = scmp.ne.s32.totalorder %s24, %s27
      %p33 = scmp.eq.s32.totalorder %s14, 0
      %p34 = por %p32, %p33
      %p35 = scmp.ne.s32.totalorder %s24, %s27
      %p36 = scmp.eq.s32.totalorder %s19, 1
      %p37 = por %p35, %p36
      %p38 = scmp.ne.s32.totalorder %s27, %s28
      %p39 = scmp.eq.s32.totalorder %s19, 0
      %p40 = por %p38, %p39
      %p41 = scmp.ne.s32.totalorder %s27, %s28
      %p42 = scmp.eq.s32.totalorder %s20, 1
      %p43 = por %p41, %p42
      %p45 = scmp.ne.s32.totalorder %s28, %s44
      %p46 = scmp.eq.s32.totalorder %s20, 0
      %p47 = por %p45, %p46
      %s49 = sadd.s32 %s48, 1
      %p52 = scmp.eq.s32.totalorder %s14, 1
      %p53 = scmp.ne.s32.totalorder %s48, %s50
      %p54 = scmp.eq.s32.totalorder %s14, 0
      %p55 = por %p53, %p54
      %p56 = scmp.ne.s32.totalorder %s48, %s50
      %p57 = scmp.eq.s32.totalorder %s19, 1
      %p58 = por %p56, %p57
      %p59 = scmp.ne.s32.totalorder %s50, %s51
      %p60 = scmp.eq.s32.totalorder %s19, 0
      %p61 = por %p59, %p60
      %p62 = scmp.ne.s32.totalorder %s50, %s51
      %p63 = scmp.eq.s32.totalorder %s20, 1
      %p64 = por %p62, %p63
      %p66 = scmp.ne.s32.totalorder %s51, %s65
      %p67 = scmp.eq.s32.totalorder %s20, 0
      %p68 = por %p66, %p67
      %s70 = sadd.s32 %s69, 1
      %p73 = scmp.eq.s32.totalorder %s14, 1
      %p74 = scmp.ne.s32.totalorder %s69, %s71
      %p75 = scmp.eq.s32.totalorder %s14, 0
      %p76 = por %p74, %p75
      %p77 = scmp.ne.s32.totalorder %s69, %s71
      %p78 = scmp.eq.s32.totalorder %s19, 1
      %p79 = por %p77, %p78
      %p80 = scmp.ne.s32.totalorder %s71, %s72
      %p81 = scmp.eq.s32.totalorder %s19, 0
      %p82 = por %p80, %p81
      %p83 = scmp.ne.s32.totalorder %s71, %s72
      %p84 = scmp.eq.s32.totalorder %s20, 1
      %p85 = por %p83, %p84
      %p87 = scmp.ne.s32.totalorder %s72, %s86
      %p88 = scmp.eq.s32.totalorder %s20, 0
      %p89 = por %p87, %p88
      %s91 = sadd.s32 %s90, 1
      %p94 = scmp.eq.s32.totalorder %s14, 1
      %p95 = scmp.ne.s32.totalorder %s90, %s92
      %p96 = scmp.eq.s32.totalorder %s14, 0
      %p97 = por %p95, %p96
      %p98 = scmp.ne.s32.totalorder %s90, %s92
      %p99 = scmp.eq.s32.totalorder %s19, 1
      %p100 = por %p98, %p99
      %p101 = scmp.ne.s32.totalorder %s92, %s93
      %p102 = scmp.eq.s32.totalorder %s19, 0
      %p103 = por %p101, %p102
      %p104 = scmp.ne.s32.totalorder %s92, %s93
      %p105 = scmp.eq.s32.totalorder %s20, 1
      %p106 = por %p104, %p105
      %p108 = scmp.ne.s32.totalorder %s93, %s107
      %p109 = scmp.eq.s32.totalorder %s20, 0
      %p110 = por %p108, %p109
      %s112 = sadd.s32 %s111, 1
      %p115 = scmp.eq.s32.totalorder %s14, 1
      %p116 = scmp.ne.s32.totalorder %s111, %s113
      %p117 = scmp.eq.s32.totalorder %s14, 0
      %p118 = por %p116, %p117
      %p119 = scmp.ne.s32.totalorder %s111, %s113
      %p120 = scmp.eq.s32.totalorder %s19, 1
      %p121 = por %p119, %p120
      %p122 = scmp.ne.s32.totalorder %s113, %s114
      %p123 = scmp.eq.s32.totalorder %s19, 0
      %p124 = por %p122, %p123
      %p125 = scmp.ne.s32.totalorder %s113, %s114
      %p126 = scmp.eq.s32.totalorder %s20, 1
      %p127 = por %p125, %p126
      %p129 = scmp.ne.s32.totalorder %s114, %s128
      %p130 = scmp.eq.s32.totalorder %s20, 0
      %p131 = por %p129, %p130
      %s132 = ssub.s32 %s14, %s21
      %p133 = scmp.eq.s32.totalorder %s132, 0
      %s135 = sadd.s32 %s134, 1
      %s136 = scalar_select %p133, %s134, %s135
      %p139 = pneg %p133
      %p140 = scmp.eq.s32.totalorder %s14, 1
      %p141 = por %p139, %p140
      %p142 = scmp.ne.s32.totalorder %s134, %s137
      %p143 = scmp.eq.s32.totalorder %s14, 0
      %p144 = por %p142, %p143
      %p145 = scmp.ne.s32.totalorder %s134, %s137
      %p146 = scmp.eq.s32.totalorder %s19, 1
      %p147 = por %p145, %p146
      %p148 = scmp.ne.s32.totalorder %s137, %s138
      %p149 = scmp.eq.s32.totalorder %s19, 0
      %p150 = por %p148, %p149
      %p151 = scmp.ne.s32.totalorder %s137, %s138
      %p152 = scmp.eq.s32.totalorder %s20, 1
      %p153 = por %p151, %p152
      %p155 = scmp.ne.s32.totalorder %s138, %s154
      %p156 = scmp.eq.s32.totalorder %s20, 0
      %p157 = por %p155, %p156
      %p158 = scmp.le.s32.totalorder 1, %s14
      %p159 = scmp.lt.s32.totalorder %s14, 3
      %p160 = pnand %p158, %p159
      %p161 = pneg %p160
      // Predicated region
      $region9: #{tpu_custom_call.1} parent=5 // pred_check
        _
      $region10: #{tpu_custom_call.1} parent=5 // pred_check_branch
        %163 = sbr.rel (%p160) target = $region12
      $region11: #{tpu_custom_call.1} parent=5 // pred_region
        %s164 = ssub.s32 %s14, 1
        // Predicated region
        $region13: #{tpu_custom_call.1} parent=11 // pred_check
          %p165 = pneg %p61
        $region14: #{tpu_custom_call.1} parent=11 // pred_check_branch
          %167 = sbr.rel (%p165) target = $region16
        $region15: #{tpu_custom_call.1} parent=11 // pred_region
          _
        $region16: #{tpu_custom_call.1} parent=11 // pred_fallthru
          _
        // Predicated region
        $region17: #{tpu_custom_call.1} parent=11 // pred_check
          %p168 = pneg %p82
        $region18: #{tpu_custom_call.1} parent=11 // pred_check_branch
          %170 = sbr.rel (%p168) target = $region20
        $region19: #{tpu_custom_call.1} parent=11 // pred_region
          _
        $region20: #{tpu_custom_call.1} parent=11 // pred_fallthru
          _
        // Predicated region
        $region21: #{tpu_custom_call.1} parent=11 // pred_check
          %p171 = pneg %p103
        $region22: #{tpu_custom_call.1} parent=11 // pred_check_branch
          %173 = sbr.rel (%p171) target = $region24
        $region23: #{tpu_custom_call.1} parent=11 // pred_region
          _
        $region24: #{tpu_custom_call.1} parent=11 // pred_fallthru
          _
        // Predicated region
        $region25: #{tpu_custom_call.1} parent=11 // pred_check
          %p174 = pneg %p124
        $region26: #{tpu_custom_call.1} parent=11 // pred_check_branch
          %176 = sbr.rel (%p174) target = $region28
        $region27: #{tpu_custom_call.1} parent=11 // pred_region
          _
        $region28: #{tpu_custom_call.1} parent=11 // pred_fallthru
          _
      $region12: #{tpu_custom_call.1} parent=5 // pred_fallthru
        _
      %p177 = scmp.lt.s32.totalorder %s14, 2
      // Predicated region
      $region29: #{tpu_custom_call.1} parent=5 // pred_check
        %p178 = pneg %p177
      $region30: #{tpu_custom_call.1} parent=5 // pred_check_branch
        %180 = sbr.rel (%p178) target = $region32
      $region31: #{tpu_custom_call.1} parent=5 // pred_region
        // Predicated region
        $region33: #{tpu_custom_call.1} parent=31 // pred_check
          %p181 = pneg %p34
        $region34: #{tpu_custom_call.1} parent=31 // pred_check_branch
          %183 = sbr.rel (%p181) target = $region36
        $region35: #{tpu_custom_call.1} parent=31 // pred_region
          %p184 = scmp.lt.s32.totalorder %s14, 1
          %s185 = scalar_select %p184, %s14, 1
          %s186 = smul.addr %s185, 8
          %s187 = smul.addr %s186, 8
          %s188 = scalar_lea.vmem %s0, %s187
        $region36: #{tpu_custom_call.1} parent=31 // pred_fallthru
          _
      $region32: #{tpu_custom_call.1} parent=5 // pred_fallthru
        _
      %p189 = scmp.le.s32.totalorder 1, %s14
      %p190 = scmp.lt.s32.totalorder %s14, 3
      %p191 = pnand %p189, %p190
      %p192 = pneg %p191
      // Predicated region
      $region37: #{tpu_custom_call.1} parent=5 // pred_check
        _
      $region38: #{tpu_custom_call.1} parent=5 // pred_check_branch
        %194 = sbr.rel (%p191) target = $region40
      $region39: #{tpu_custom_call.1} parent=5 // pred_region
        %s195 = ssub.s32 %s14, 1
        %p196 = scmp.lt.s32.totalorder %s19, 1
        %s197 = scalar_select %p196, %s19, 1
        %s198 = smul.addr %s197, 8
        %s199 = smul.addr %s198, 8
        %s200 = scalar_lea.vmem %s0, %s199
        %p201 = pneg %p40
        %p202 = pneg %p37
        %p203 = pneg %p61
        %p204 = pneg %p58
        %p205 = pneg %p82
        %p206 = pneg %p79
        %p207 = pneg %p103
        %p208 = pneg %p100
        %p209 = pneg %p124
        %p210 = pneg %p121
        %p211 = pneg %p150
        %p212 = pneg %p147
        %s213 = sand.u32 %s137, 1
        %s214 = scalar_lea.sflag [#allocation3], %s213
        %s215 = sand.u32 %s137, 1
        %s216 = smul.addr %s215, 64
        %s217 = scalar_lea.vmem [#allocation2], %s216
        %p218 = scmp.lt.s32.totalorder %s19, 1
        %s219 = scalar_select %p218, %s19, 1
        %s220 = smul.addr %s219, 8
        %s221 = smul.addr %s220, 8
        %s222 = scalar_lea.vmem %s0, %s221
        %v223 = vld [vmem:[%s222] sm:$0xff]
        %v224 = vld [vmem:[%s222 + $0x8] sm:$0xff]
        %v225 = vld [vmem:[%s222 + $0x10] sm:$0xff]
        %v226 = vld [vmem:[%s222 + $0x18] sm:$0xff]
        %v227 = vld [vmem:[%s222 + $0x20] sm:$0xff]
        %v228 = vld [vmem:[%s222 + $0x28] sm:$0xff]
        %v229 = vld [vmem:[%s222 + $0x30] sm:$0xff]
        %v230 = vld [vmem:[%s222 + $0x38] sm:$0xff]
        %v231 = vadd.f32 %v223, %v224
        %v232 = vadd.f32 %v231, %v225
        %v233 = vadd.f32 %v232, %v226
        %v234 = vadd.f32 %v233, %v227
        %v235 = vadd.f32 %v234, %v228
        %v236 = vadd.f32 %v235, %v229
        %v237 = vadd.f32 %v236, %v230
        %v238 = vrot.slane %v237, 4
        %v239 = vadd.f32 %v237, %v238
        %v240 = vrot.slane %v239, 2
        %v241 = vadd.f32 %v239, %v240
        %v242 = vrot.slane %v241, 1
        %v243 = vadd.f32 %v241, %v242
        %v244 = vrcp.pop 64.0
        %v245 = vmul.f32 %v243, %v244
        %v246 = vld [vmem:[%s1] sm:$0xff]
        %v247 = vld [vmem:[%s1 + $0x8] sm:$0xff]
        %v248 = vld [vmem:[%s1 + $0x10] sm:$0xff]
        %v249 = vld [vmem:[%s1 + $0x18] sm:$0xff]
        %v250 = vld [vmem:[%s1 + $0x20] sm:$0xff]
        %v251 = vld [vmem:[%s1 + $0x28] sm:$0xff]
        %v252 = vld [vmem:[%s1 + $0x30] sm:$0xff]
        %v253 = vld [vmem:[%s1 + $0x38] sm:$0xff]
        %v254 = vld [vmem:[%s1 + $0x40] sm:$0xff]
        %v255 = vld [vmem:[%s1 + $0x48] sm:$0xff]
        %v256 = vld [vmem:[%s1 + $0x50] sm:$0xff]
        %v257 = vld [vmem:[%s1 + $0x58] sm:$0xff]
        %v258 = vld [vmem:[%s1 + $0x60] sm:$0xff]
        %v259 = vld [vmem:[%s1 + $0x68] sm:$0xff]
        %v260 = vld [vmem:[%s1 + $0x70] sm:$0xff]
        %v261 = vld [vmem:[%s1 + $0x78] sm:$0xff]
        %v262 = vld [vmem:[%s2] sm:$0x1]
        %263 = vmatprep.subr.mxu0 0.0
        %264 = vmatpush1.msra.mxu0 %v246
        %265 = vmatprep.subr.mxu0 0.0
        %266 = vmatpush1.msra.mxu0 %v247
        %267 = vmatprep.subr.mxu0 0.0
        %268 = vmatpush1.msra.mxu0 %v248
        %269 = vmatprep.subr.mxu0 0.0
        %270 = vmatpush1.msra.mxu0 %v249
        %271 = vmatprep.subr.mxu0 0.0
        %272 = vmatpush1.msra.mxu0 %v250
        %273 = vmatprep.subr.mxu0 0.0
        %274 = vmatpush1.msra.mxu0 %v251
        %275 = vmatprep.subr.mxu0 0.0
        %276 = vmatpush1.msra.mxu0 %v252
        %277 = vmatprep.subr.mxu0 0.0
        %278 = vmatpush1.msra.mxu0 %v253
        %279 = vmatprep.subr.mxu0 0.0
        %280 = vmatpush1.msra.mxu0 %v254
        %281 = vmatprep.subr.mxu0 0.0
        %282 = vmatpush1.msra.mxu0 %v255
        %283 = vmatprep.subr.mxu0 0.0
        %284 = vmatpush1.msra.mxu0 %v256
        %285 = vmatprep.subr.mxu0 0.0
        %286 = vmatpush1.msra.mxu0 %v257
        %287 = vmatprep.subr.mxu0 0.0
        %288 = vmatpush1.msra.mxu0 %v258
        %289 = vmatprep.subr.mxu0 0.0
        %290 = vmatpush1.msra.mxu0 %v259
        %291 = vmatprep.subr.mxu0 0.0
        %292 = vmatpush1.msra.mxu0 %v260
        %293 = vmatprep.subr.mxu0 0.0
        %294 = vmatpush1.msra.mxu0 %v261
        %295 = vmatprep.subr.mxu0 0.0
        %296 = vmatpush1.msra.mxu0 0.0
        %297 = vmatprep.subr.mxu0 0.0
        %298 = vmatpush1.msra.mxu0 0.0
        %299 = vmatprep.subr.mxu0 0.0
        %300 = vmatpush1.msra.mxu0 0.0
        %301 = vmatprep.subr.mxu0 0.0
        %302 = vmatpush1.msra.mxu0 0.0
        %303 = vmatprep.subr.mxu0 0.0
        %304 = vmatpush1.msra.mxu0 0.0
        %305 = vmatprep.subr.mxu0 0.0
        %306 = vmatpush1.msra.mxu0 0.0
        %307 = vmatprep.subr.mxu0 0.0
        %308 = vmatpush1.msra.mxu0 0.0
        %309 = vmatprep.subr.mxu0 0.0
        %310 = vmatpush1.msra.mxu0 0.0
        %311 = vmatprep.subr.mxu0 0.0
        %312 = vmatpush1.msra.mxu0 0.0
        %313 = vmatprep.subr.mxu0 0.0
        %314 = vmatpush1.msra.mxu0 0.0
        %315 = vmatprep.subr.mxu0 0.0
        %316 = vmatpush1.msra.mxu0 0.0
        %317 = vmatprep.subr.mxu0 0.0
        %318 = vmatpush1.msra.mxu0 0.0
        %319 = vmatprep.subr.mxu0 0.0
        %320 = vmatpush1.msra.mxu0 0.0
        %321 = vmatprep.subr.mxu0 0.0
        %322 = vmatpush1.msra.mxu0 0.0
        %323 = vmatprep.subr.mxu0 0.0
        %324 = vmatpush1.msra.mxu0 0.0
        %325 = vmatprep.subr.mxu0 0.0
        %326 = vmatpush1.msra.mxu0 0.0
        %327 = vmatprep.mubr.f32.mxu0 0.0
        %328 = vmatmul.mubr.f32.gmra.mrb[0].mxu0 %v245
        %v329 = vpop.f32.mrb[0].mxu0
        %v330 = vadd.f32 %v262, %v329
        %v331 = vpop.f32.mrb[0].mxu0
        %332 = vdwg.mxu0
        %v333 = vmax.f32 %v330, 0.0
        %v334 = vld [vmem:[%s3] sm:$0xff]
        %v335 = vld [vmem:[%s4] sm:$0x1]
        %vm336 = vcmask 64512
        %v338 = vsel %vm336, %v333, 0
        %340 = vmatprep.subr.mxu0 0.0
        %341 = vmatpush1.msra.mxu0 %v334
        %342 = vmatprep.subr.mxu0 0.0
        %343 = vmatpush1.msra.mxu0 0.0
        %344 = vmatprep.subr.mxu0 0.0
        %345 = vmatpush1.msra.mxu0 0.0
        %346 = vmatprep.subr.mxu0 0.0
        %347 = vmatpush1.msra.mxu0 0.0
        %348 = vmatprep.subr.mxu0 0.0
        %349 = vmatpush1.msra.mxu0 0.0
        %350 = vmatprep.subr.mxu0 0.0
        %351 = vmatpush1.msra.mxu0 0.0
        %352 = vmatprep.subr.mxu0 0.0
        %353 = vmatpush1.msra.mxu0 0.0
        %354 = vmatprep.subr.mxu0 0.0
        %355 = vmatpush1.msra.mxu0 0.0
        %356 = vmatprep.subr.mxu0 0.0
        %357 = vmatpush1.msra.mxu0 0.0
        %358 = vmatprep.subr.mxu0 0.0
        %359 = vmatpush1.msra.mxu0 0.0
        %360 = vmatprep.subr.mxu0 0.0
        %361 = vmatpush1.msra.mxu0 0.0
        %362 = vmatprep.subr.mxu0 0.0
        %363 = vmatpush1.msra.mxu0 0.0
        %364 = vmatprep.subr.mxu0 0.0
        %365 = vmatpush1.msra.mxu0 0.0
        %366 = vmatprep.subr.mxu0 0.0
        %367 = vmatpush1.msra.mxu0 0.0
        %368 = vmatprep.subr.mxu0 0.0
        %369 = vmatpush1.msra.mxu0 0.0
        %370 = vmatprep.subr.mxu0 0.0
        %371 = vmatpush1.msra.mxu0 0.0
        %372 = vmatprep.subr.mxu0 0.0
        %373 = vmatpush1.msra.mxu0 0.0
        %374 = vmatprep.subr.mxu0 0.0
        %375 = vmatpush1.msra.mxu0 0.0
        %376 = vmatprep.subr.mxu0 0.0
        %377 = vmatpush1.msra.mxu0 0.0
        %378 = vmatprep.subr.mxu0 0.0
        %379 = vmatpush1.msra.mxu0 0.0
        %380 = vmatprep.subr.mxu0 0.0
        %381 = vmatpush1.msra.mxu0 0.0
        %382 = vmatprep.subr.mxu0 0.0
        %383 = vmatpush1.msra.mxu0 0.0
        %384 = vmatprep.subr.mxu0 0.0
        %385 = vmatpush1.msra.mxu0 0.0
        %386 = vmatprep.subr.mxu0 0.0
        %387 = vmatpush1.msra.mxu0 0.0
        %388 = vmatprep.subr.mxu0 0.0
        %389 = vmatpush1.msra.mxu0 0.0
        %390 = vmatprep.subr.mxu0 0.0
        %391 = vmatpush1.msra.mxu0 0.0
        %392 = vmatprep.subr.mxu0 0.0
        %393 = vmatpush1.msra.mxu0 0.0
        %394 = vmatprep.subr.mxu0 0.0
        %395 = vmatpush1.msra.mxu0 0.0
        %396 = vmatprep.subr.mxu0 0.0
        %397 = vmatpush1.msra.mxu0 0.0
        %398 = vmatprep.subr.mxu0 0.0
        %399 = vmatpush1.msra.mxu0 0.0
        %400 = vmatprep.subr.mxu0 0.0
        %401 = vmatpush1.msra.mxu0 0.0
        %402 = vmatprep.subr.mxu0 0.0
        %403 = vmatpush1.msra.mxu0 0.0
        %404 = vmatprep.mubr.f32.mxu0 0.0
        %405 = vmatmul.mubr.f32.gmra.mrb[0].mxu0 %v338
        %v406 = vpop.f32.mrb[0].mxu0
        %v407 = vadd.f32 %v335, %v406
        %v408 = vpop.f32.mrb[0].mxu0
        %409 = vdwg.mxu0
        %v410 = vxor.u32 %v407, 2147483648
        %v411 = vmul.f32 %v410, 1.442695
        %v412 = vpow.pop %v411
        %v413 = vadd.f32 %v412, 1.0
        %v414 = vrcp.pop %v413
        %v415 = vmul.f32 1.0, %v414
        %v416 = vlaneseq
        %v417 = vshrl.u32 %v416, 7
        %v418 = vsub.s32 0, %v417
        %v419 = vrot.slane %v415, %v418
        %v420 = vmul.f32 %v223, %v419
        %v421 = vmul.f32 %v224, %v419
        %v422 = vmul.f32 %v225, %v419
        %v423 = vmul.f32 %v226, %v419
        %v424 = vmul.f32 %v227, %v419
        %v425 = vmul.f32 %v228, %v419
        %v426 = vmul.f32 %v229, %v419
        %v427 = vmul.f32 %v230, %v419
        %428 = vst [vmem:[%s217] sm:$0xff] %v420
        %429 = vst [vmem:[%s217 + $0x8] sm:$0xff] %v421
        %430 = vst [vmem:[%s217 + $0x10] sm:$0xff] %v422
        %431 = vst [vmem:[%s217 + $0x18] sm:$0xff] %v423
        %432 = vst [vmem:[%s217 + $0x20] sm:$0xff] %v424
        %433 = vst [vmem:[%s217 + $0x28] sm:$0xff] %v425
        %434 = vst [vmem:[%s217 + $0x30] sm:$0xff] %v426
        %435 = vst [vmem:[%s217 + $0x38] sm:$0xff] %v427
        %s436 = sand.u32 %s137, 1
        %s437 = scalar_lea.sflag [#allocation3], %s436
        %s438 = sand.u32 %s137, 1
        %s439 = smul.addr %s438, 64
        %s440 = scalar_lea.vmem [#allocation2], %s439
        // Predicated region
        $region41: #{tpu_custom_call.1} parent=39 // pred_check
          %p441 = pneg %p147
        $region42: #{tpu_custom_call.1} parent=39 // pred_check_branch
          %443 = sbr.rel (%p441) target = $region44
        $region43: #{tpu_custom_call.1} parent=39 // pred_region
          %s445 = ssub.s32 1024, 1024
          %446 = vsyncadd %s437, %s445
          %s447 = smul.addr %s19, 8
          %s448 = smul.addr %s447, 128
          %s449 = scalar_lea.hbm %s5, %s448
          %s450 = sshll.u32 %s440, 4
          %s451 = int_to_ptr.vmem [resolvable:$true] %s450
          %456 = dma.vmem_to_hbm [thread:$0]  %s451, 1024, %s449, %s437, 128, 128, 8
        $region44: #{tpu_custom_call.1} parent=39 // pred_fallthru
          _
      $region40: #{tpu_custom_call.1} parent=5 // pred_fallthru
        _
      %p457 = scmp.le.s32.totalorder 2, %s14
      // Predicated region
      $region45: #{tpu_custom_call.1} parent=5 // pred_check
        %p458 = pneg %p457
      $region46: #{tpu_custom_call.1} parent=5 // pred_check_branch
        %460 = sbr.rel (%p458) target = $region48
      $region47: #{tpu_custom_call.1} parent=5 // pred_region
        %s461 = ssub.s32 %s14, 2
        // Predicated region
        $region49: #{tpu_custom_call.1} parent=47 // pred_check
          %p462 = pneg %p153
        $region50: #{tpu_custom_call.1} parent=47 // pred_check_branch
          %464 = sbr.rel (%p462) target = $region52
        $region51: #{tpu_custom_call.1} parent=47 // pred_region
          %s465 = sand.u32 %s138, 1
          %s466 = scalar_lea.sflag [#allocation3], %s465
          %s467 = sand.u32 %s138, 1
          %s468 = smul.addr %s467, 64
          %s469 = scalar_lea.vmem [#allocation2], %s468
          %470 = dma.done %s466, 1024
        $region52: #{tpu_custom_call.1} parent=47 // pred_fallthru
          _
      $region48: #{tpu_custom_call.1} parent=5 // pred_fallthru
        _
    $region6: #{tpu_custom_call.1} parent=1 // loop_footer
      %s18 = sadd.s32 1, %s14
    $region7: #{tpu_custom_call.1} parent=1 // loop_footer_branch
      %13 = sbr.rel target = $region3
    $region8: #{tpu_custom_call.1} parent=1 // loop_exit
      _
    %471 = vsyncpa [#allocation3], 1
    %s472 = scalar_lea.sflag [#allocation3], 1
    %473 = vsyncpa %s472, 1

</llo_original>
